<compile_context>
chip_gen: v5e
topology: v5e:2x2
jax: 0.10.0
libtpu: 0.0.40
codegen_flags: <defaults>
</compile_context>

<pallas_src>
import functools

import numpy as np
import jax
import jax.numpy as jnp
from jax import lax
from jax.experimental import pallas as pl
from jax.experimental.pallas import tpu as pltpu


# -----------------------------------------------------------------------------
# Band-pass filter construction (deterministic, numpy; mirrors
# construct_bandpass_filter from models/bandpass_net.py).
# -----------------------------------------------------------------------------
def _human_filter_2(shape, x_freqs, custom_sigma):
    # TODO(synk): original `filter.human_filter_2` (human CSF fit) is not
    # available; deterministic radial Gaussian band-pass in frequency domain
    # used as a stand-in with identical shapes/dtypes.
    sigma = 30.0 if custom_sigma is None else float(custom_sigma)
    peak = 40.0
    center = x_freqs[len(x_freqs) // 2]
    fx = x_freqs[None, :]
    fy = x_freqs[:, None]
    r = np.sqrt((fx - center) ** 2 + (fy - center) ** 2)
    fil_recon = np.exp(-((r - peak) ** 2) / (2.0 * sigma ** 2)).astype(np.float64)
    gauss_fit = np.array([peak, sigma], dtype=np.float64)
    return gauss_fit, fil_recon


def construct_bandpass_filter(kernel_size, custom_sigma):
    x_freqs = np.linspace(0, kernel_size, kernel_size)
    x_freqs = x_freqs / kernel_size * 224.0
    gauss_fit, fil_recon = _human_filter_2((kernel_size, kernel_size), x_freqs, custom_sigma)
    fil_recon_shifted = np.fft.ifftshift(fil_recon)
    spatial_filter = np.fft.ifft2(fil_recon_shifted)
    spatial_filter = np.fft.ifftshift(spatial_filter)
    spatial_filter_real = np.real(spatial_filter)
    spatial_filter_imag = np.imag(spatial_filter)
    spatial_filter_real = jnp.asarray(np.flip(spatial_filter_real).copy(), dtype=jnp.float32)
    spatial_filter_imag = jnp.asarray(np.flip(spatial_filter_imag).copy(), dtype=jnp.float32)
    return gauss_fit, fil_recon, spatial_filter_real, spatial_filter_imag


def _filter_taps(w):
    """Bake the frozen (K, K) filter as nested Python float constants."""
    w_np = np.asarray(w, dtype=np.float32)
    return tuple(tuple(float(v) for v in row) for row in w_np)


def _effective_pool_weights(w_np, H, W):
    """(H, W) weights s.t. mean(conv_reflect(x)) == sum_{h,w} Weff[h,w]*x[.,.,h,w].

    Folds the K*K taps, the reflect 'same' padding and the 1/(H*W) global-average
    pooling factor into one constant map (numpy, trace time).
    """
    K = w_np.shape[0]
    pad = (K - 1) // 2
    Hp, Wp = H + 2 * pad, W + 2 * pad
    # weight each padded position by the sum of taps of every window covering it
    weff_p = np.zeros((Hp, Wp), np.float64)
    for dy in range(K):
        for dx in range(K):
            weff_p[dy:dy + H, dx:dx + W] += float(w_np[dy, dx])
    # fold the reflect padding: padded index -> original index
    ridx = np.pad(np.arange(H), pad, mode="reflect")
    cidx = np.pad(np.arange(W), pad, mode="reflect")
    weff = np.zeros((H, W), np.float64)
    for hp in range(Hp):
        for wp in range(Wp):
            weff[ridx[hp], cidx[wp]] += weff_p[hp, wp]
    return (weff / float(H * W)).astype(np.float32)


def _largest_divisor_leq(n, cap):
    cap = max(1, min(n, cap))
    for d in range(cap, 0, -1):
        if n % d == 0:
            return d
    return 1


def _pick_batch_block(n, cap):
    """Batch block for the pooled (Nb, C) output: partial blocks must keep the
    sublane dim a multiple of 8 (or cover the full batch)."""
    if n <= cap:
        return n
    for d in range(min(cap, n), 7, -1):
        if n % d == 0 and d % 8 == 0:
            return d
    return n


# -----------------------------------------------------------------------------
# Pallas kernels
# -----------------------------------------------------------------------------
def _reflect_pad_value(x, pad):
    """Reflect-pad the last two (sublane/lane) axes of a (C, H, W) value in-kernel."""
    _, H, W = x.shape
    # rows (sublane axis): padded row p = original row pad-p (top), H-2-i (bottom)
    top = [x[:, pad - p:pad - p + 1, :] for p in range(pad)]
    bot = [x[:, H - 2 - i:H - 1 - i, :] for i in range(pad)]
    xr = jnp.concatenate(top + [x] + bot, axis=1)                  # (C, Hp, W)
    # cols (lane axis)
    left = [xr[:, :, pad - p:pad - p + 1] for p in range(pad)]
    right = [xr[:, :, W - 2 - i:W - 1 - i] for i in range(pad)]
    return jnp.concatenate(left + [xr] + right, axis=2)            # (C, Hp, Wp)


def _bandpass_filter_kernel(x_ref, o_ref, *, taps):
    """filter_only path: depthwise band-pass conv of one (Cb, H, W) block."""
    K = len(taps)
    pad = (K - 1) // 2
    _, H, W = x_ref.shape
    x = x_ref[...].astype(jnp.float32)          # uniform f32 compute
    xp = _reflect_pad_value(x, pad)             # (Cb, Hp, Wp), in-register
    # hoist the dx (lane) shifts out of the 25-tap loop: K lane relayouts total
    xs = [xp[:, :, dx:dx + W] for dx in range(K)]
    # split the serial accumulate chain into 4 partials to restore VALU ILP
    parts = [None, None, None, None]
    idx = 0
    for dy in range(K):                         # static unroll: immediate * slice
        for dx in range(K):
            term = taps[dy][dx] * xs[dx][:, dy:dy + H, :]
            p = idx & 3
            parts[p] = term if parts[p] is None else parts[p] + term
            idx += 1
    acc = (parts[0] + parts[1]) + (parts[2] + parts[3])
    o_ref[...] = acc.astype(o_ref.dtype)


def _bandpass_pool_kernel(x_ref, w_ref, o_ref):
    """Fused conv + reflect padding + global-average-pool via a (H, W) weight map."""
    x = x_ref[...].astype(jnp.float32)          # (Nb, C, H, W)
    w = w_ref[...]                              # (H, W), includes 1/(H*W)
    pooled = (x * w[None, None, :, :]).sum(axis=3).sum(axis=2)     # (Nb, C)
    o_ref[...] = pooled.astype(o_ref.dtype)


# -----------------------------------------------------------------------------
# Wrappers
# -----------------------------------------------------------------------------
_DEFAULT_VMEM_LIMIT = 64 * 1024 * 1024   # <= physical VMEM on v5e/v6e/v7x


def bandpass_conv(x, w_real, *, block_c=8, vmem_limit_bytes=_DEFAULT_VMEM_LIMIT):
    """Depthwise band-pass conv, reflect 'same' padding done in-kernel (NCHW)."""
    N, C, H, W = x.shape
    taps = _filter_taps(w_real)
    cb = _largest_divisor_leq(C, block_c)

    return pl.pallas_call(
        functools.partial(_bandpass_filter_kernel, taps=taps),
        out_shape=jax.ShapeDtypeStruct((N, C, H, W), x.dtype),
        grid=(N, C // cb),
        in_specs=[pl.BlockSpec((None, cb, H, W), lambda n, c: (n, c, 0, 0))],
        out_specs=pl.BlockSpec((None, cb, H, W), lambda n, c: (n, c, 0, 0)),
        compiler_params=pltpu.CompilerParams(
            dimension_semantics=("parallel", "parallel"),
            vmem_limit_bytes=vmem_limit_bytes),
    )(x)


def bandpass_conv_pooled(x, w_real, *, block_n=8, vmem_limit_bytes=_DEFAULT_VMEM_LIMIT):
    """Fused depthwise band-pass conv + global average pool -> (N, C).

    x is read from HBM exactly once; the filtered activation is never
    materialized (linearity: conv + reflect-pad + mean fold into one weight map).
    """
    N, C, H, W = x.shape
    weff = jnp.asarray(_effective_pool_weights(np.asarray(w_real, np.float32), H, W))
    nb = _pick_batch_block(N, block_n)

    return pl.pallas_call(
        _bandpass_pool_kernel,
        out_shape=jax.ShapeDtypeStruct((N, C), jnp.float32),
        grid=(N // nb,),
        in_specs=[pl.BlockSpec((nb, C, H, W), lambda i: (i, 0, 0, 0)),
                  pl.BlockSpec((H, W), lambda i: (0, 0))],
        out_specs=pl.BlockSpec((nb, C), lambda i: (i, 0)),
        compiler_params=pltpu.CompilerParams(
            dimension_semantics=("parallel",),
            vmem_limit_bytes=vmem_limit_bytes),
    )(x, weff)


def bandpass_net_forward(x, w_real, w_cls, b_cls, filter_only=False):
    """BandPassNet.forward: x -> conv_real(x) -> (optionally) classifier(x)."""
    if filter_only:
        return bandpass_conv(x, w_real)
    # TODO(synk): the original `classifier` is an arbitrary injected nn.Module;
    # a deterministic global-avg-pool + linear head is used as a stand-in.
    # Conv + pooling are fused into one kernel; the tiny (N,C)@(C,NC) matmul +
    # bias is cheaper as a plain XLA op than as a dedicated pallas_call.
    pooled = bandpass_conv_pooled(x, w_real)            # (N, C)
    return pooled @ w_cls + b_cls                       # (N, NUM_CLASSES)


# -----------------------------------------------------------------------------
# Main
# -----------------------------------------------------------------------------
if __name__ == "__main__":
    key = jax.random.PRNGKey(0)
    k_x, k_w, k_b = jax.random.split(key, 3)

    N, C, H, W = 2, 4, 16, 16       # batch=2, in_channels=4, spatial=16
    K = 5                           # kernel_size
    NUM_CLASSES = 10

    x = jax.random.normal(k_x, (N, C, H, W), dtype=jnp.float32)
    _, _, w_real, w_imag = construct_bandpass_filter(K, custom_sigma=None)  # w_imag unused (as in forward)
    w_cls = jax.random.normal(k_w, (C, NUM_CLASSES), jnp.float32) * 0.1
    b_cls = jax.random.normal(k_b, (1, NUM_CLASSES), jnp.float32) * 0.1

    # filter_only path (explicit conv kernel, in-kernel reflect padding)
    filtered = jax.block_until_ready(
        bandpass_net_forward(x, w_real, w_cls, b_cls, filter_only=True))
    # full forward path (fused conv + pool kernel, classifier head in JAX)
    logits = jax.block_until_ready(
        bandpass_net_forward(x, w_real, w_cls, b_cls))
    assert logits.shape == (N, NUM_CLASSES)

    # Reference checks against lax depthwise conv on reflect-padded input.
    pad = (K - 1) // 2
    x_pad = jnp.pad(x, ((0, 0), (0, 0), (pad, pad), (pad, pad)), mode="reflect")
    rhs = jnp.broadcast_to(w_real, (C, 1, K, K))
    ref_filtered = lax.conv_general_dilated(
        x_pad, rhs, window_strides=(1, 1), padding="VALID",
        dimension_numbers=("NCHW", "OIHW", "NCHW"), feature_group_count=C)
    np.testing.assert_allclose(np.asarray(filtered), np.asarray(ref_filtered),
                               rtol=1e-4, atol=1e-4)

    ref_logits = ref_filtered.mean(axis=(2, 3)) @ w_cls + b_cls
    np.testing.assert_allclose(np.asarray(logits), np.asarray(ref_logits),
                               rtol=1e-4, atol=1e-4)

    print("KERNEL_OK")
</pallas_src>

<mosaic_0001>
module attributes {stable_mosaic.version = 11 : i64} {
  func.func @_bandpass_filter_kernel(%arg0: i32, %arg1: i32, %arg2: memref<1x4x16x16xf32, #tpu.memory_space<vmem>>, %arg3: memref<1x4x16x16xf32, #tpu.memory_space<vmem>>) attributes {dimension_semantics = [#tpu.dimension_semantics<parallel>, #tpu.dimension_semantics<parallel>], iteration_bounds = array<i64: 2, 1>, scalar_prefetch = 0 : i64, scratch_operands = 0 : i64, tpu.core_type = #tpu.core_type<tc>, window_params = [{transform_indices = @transform_0, window_bounds = array<i64: 1, 4, 16, 16>}, {transform_indices = @transform_1, window_bounds = array<i64: 1, 4, 16, 16>}]} {
    %c0 = arith.constant 0 : index
    %c0_0 = arith.constant 0 : index
    %c0_1 = arith.constant 0 : index
    %c0_2 = arith.constant 0 : index
    %0 = vector.load %arg2[%c0, %c0_0, %c0_1, %c0_2] : memref<1x4x16x16xf32, #tpu.memory_space<vmem>>, vector<1x4x16x16xf32>
    %1 = vector.shape_cast %0 : vector<1x4x16x16xf32> to vector<4x16x16xf32>
    %2 = vector.extract_strided_slice %1 {offsets = [0, 2, 0], sizes = [4, 1, 16], strides = [1, 1, 1]} : vector<4x16x16xf32> to vector<4x1x16xf32>
    %3 = vector.extract_strided_slice %1 {offsets = [0, 1, 0], sizes = [4, 1, 16], strides = [1, 1, 1]} : vector<4x16x16xf32> to vector<4x1x16xf32>
    %4 = vector.extract_strided_slice %1 {offsets = [0, 14, 0], sizes = [4, 1, 16], strides = [1, 1, 1]} : vector<4x16x16xf32> to vector<4x1x16xf32>
    %5 = vector.extract_strided_slice %1 {offsets = [0, 13, 0], sizes = [4, 1, 16], strides = [1, 1, 1]} : vector<4x16x16xf32> to vector<4x1x16xf32>
    %6 = tpu.concatenate %2, %3, %1, %4, %5 in 1 : vector<4x1x16xf32>, vector<4x1x16xf32>, vector<4x16x16xf32>, vector<4x1x16xf32>, vector<4x1x16xf32> -> vector<4x20x16xf32>
    %7 = vector.extract_strided_slice %6 {offsets = [0, 0, 2], sizes = [4, 20, 1], strides = [1, 1, 1]} : vector<4x20x16xf32> to vector<4x20x1xf32>
    %8 = vector.extract_strided_slice %6 {offsets = [0, 0, 1], sizes = [4, 20, 1], strides = [1, 1, 1]} : vector<4x20x16xf32> to vector<4x20x1xf32>
    %9 = vector.extract_strided_slice %6 {offsets = [0, 0, 14], sizes = [4, 20, 1], strides = [1, 1, 1]} : vector<4x20x16xf32> to vector<4x20x1xf32>
    %10 = vector.extract_strided_slice %6 {offsets = [0, 0, 13], sizes = [4, 20, 1], strides = [1, 1, 1]} : vector<4x20x16xf32> to vector<4x20x1xf32>
    %11 = tpu.concatenate %7, %8, %6, %9, %10 in 2 : vector<4x20x1xf32>, vector<4x20x1xf32>, vector<4x20x16xf32>, vector<4x20x1xf32>, vector<4x20x1xf32> -> vector<4x20x20xf32>
    %12 = vector.extract_strided_slice %11 {offsets = [0, 0, 0], sizes = [4, 20, 16], strides = [1, 1, 1]} : vector<4x20x20xf32> to vector<4x20x16xf32>
    %13 = vector.extract_strided_slice %11 {offsets = [0, 0, 1], sizes = [4, 20, 16], strides = [1, 1, 1]} : vector<4x20x20xf32> to vector<4x20x16xf32>
    %14 = vector.extract_strided_slice %11 {offsets = [0, 0, 2], sizes = [4, 20, 16], strides = [1, 1, 1]} : vector<4x20x20xf32> to vector<4x20x16xf32>
    %15 = vector.extract_strided_slice %11 {offsets = [0, 0, 3], sizes = [4, 20, 16], strides = [1, 1, 1]} : vector<4x20x20xf32> to vector<4x20x16xf32>
    %16 = vector.extract_strided_slice %11 {offsets = [0, 0, 4], sizes = [4, 20, 16], strides = [1, 1, 1]} : vector<4x20x20xf32> to vector<4x20x16xf32>
    %17 = vector.extract_strided_slice %12 {offsets = [0, 0, 0], sizes = [4, 16, 16], strides = [1, 1, 1]} : vector<4x20x16xf32> to vector<4x16x16xf32>
    %cst = arith.constant 0.0572018512 : f32
    %18 = vector.broadcast %cst : f32 to vector<4x16x16xf32>
    %19 = arith.mulf %18, %17 : vector<4x16x16xf32>
    %20 = vector.extract_strided_slice %13 {offsets = [0, 0, 0], sizes = [4, 16, 16], strides = [1, 1, 1]} : vector<4x20x16xf32> to vector<4x16x16xf32>
    %cst_3 = arith.constant 0.127729848 : f32
    %21 = vector.broadcast %cst_3 : f32 to vector<4x16x16xf32>
    %22 = arith.mulf %21, %20 : vector<4x16x16xf32>
    %23 = vector.extract_strided_slice %14 {offsets = [0, 0, 0], sizes = [4, 16, 16], strides = [1, 1, 1]} : vector<4x20x16xf32> to vector<4x16x16xf32>
    %cst_4 = arith.constant 0.0572018512 : f32
    %24 = vector.broadcast %cst_4 : f32 to vector<4x16x16xf32>
    %25 = arith.mulf %24, %23 : vector<4x16x16xf32>
    %26 = vector.extract_strided_slice %15 {offsets = [0, 0, 0], sizes = [4, 16, 16], strides = [1, 1, 1]} : vector<4x20x16xf32> to vector<4x16x16xf32>
    %cst_5 = arith.constant -0.0354283154 : f32
    %27 = vector.broadcast %cst_5 : f32 to vector<4x16x16xf32>
    %28 = arith.mulf %27, %26 : vector<4x16x16xf32>
    %29 = vector.extract_strided_slice %16 {offsets = [0, 0, 0], sizes = [4, 16, 16], strides = [1, 1, 1]} : vector<4x20x16xf32> to vector<4x16x16xf32>
    %cst_6 = arith.constant -0.0354283154 : f32
    %30 = vector.broadcast %cst_6 : f32 to vector<4x16x16xf32>
    %31 = arith.mulf %30, %29 : vector<4x16x16xf32>
    %32 = arith.addf %19, %31 : vector<4x16x16xf32>
    %33 = vector.extract_strided_slice %12 {offsets = [0, 1, 0], sizes = [4, 16, 16], strides = [1, 1, 1]} : vector<4x20x16xf32> to vector<4x16x16xf32>
    %cst_7 = arith.constant 0.127729848 : f32
    %34 = vector.broadcast %cst_7 : f32 to vector<4x16x16xf32>
    %35 = arith.mulf %34, %33 : vector<4x16x16xf32>
    %36 = arith.addf %22, %35 : vector<4x16x16xf32>
    %37 = vector.extract_strided_slice %13 {offsets = [0, 1, 0], sizes = [4, 16, 16], strides = [1, 1, 1]} : vector<4x20x16xf32> to vector<4x16x16xf32>
    %cst_8 = arith.constant 0.238088861 : f32
    %38 = vector.broadcast %cst_8 : f32 to vector<4x16x16xf32>
    %39 = arith.mulf %38, %37 : vector<4x16x16xf32>
    %40 = arith.addf %25, %39 : vector<4x16x16xf32>
    %41 = vector.extract_strided_slice %14 {offsets = [0, 1, 0], sizes = [4, 16, 16], strides = [1, 1, 1]} : vector<4x20x16xf32> to vector<4x16x16xf32>
    %cst_9 = arith.constant 0.127729848 : f32
    %42 = vector.broadcast %cst_9 : f32 to vector<4x16x16xf32>
    %43 = arith.mulf %42, %41 : vector<4x16x16xf32>
    %44 = arith.addf %28, %43 : vector<4x16x16xf32>
    %45 = vector.extract_strided_slice %15 {offsets = [0, 1, 0], sizes = [4, 16, 16], strides = [1, 1, 1]} : vector<4x20x16xf32> to vector<4x16x16xf32>
    %cst_10 = arith.constant -0.0209504012 : f32
    %46 = vector.broadcast %cst_10 : f32 to vector<4x16x16xf32>
    %47 = arith.mulf %46, %45 : vector<4x16x16xf32>
    %48 = arith.addf %32, %47 : vector<4x16x16xf32>
    %49 = vector.extract_strided_slice %16 {offsets = [0, 1, 0], sizes = [4, 16, 16], strides = [1, 1, 1]} : vector<4x20x16xf32> to vector<4x16x16xf32>
    %cst_11 = arith.constant -0.0209504012 : f32
    %50 = vector.broadcast %cst_11 : f32 to vector<4x16x16xf32>
    %51 = arith.mulf %50, %49 : vector<4x16x16xf32>
    %52 = arith.addf %36, %51 : vector<4x16x16xf32>
    %53 = vector.extract_strided_slice %12 {offsets = [0, 2, 0], sizes = [4, 16, 16], strides = [1, 1, 1]} : vector<4x20x16xf32> to vector<4x16x16xf32>
    %cst_12 = arith.constant 0.0572018512 : f32
    %54 = vector.broadcast %cst_12 : f32 to vector<4x16x16xf32>
    %55 = arith.mulf %54, %53 : vector<4x16x16xf32>
    %56 = arith.addf %40, %55 : vector<4x16x16xf32>
    %57 = vector.extract_strided_slice %13 {offsets = [0, 2, 0], sizes = [4, 16, 16], strides = [1, 1, 1]} : vector<4x20x16xf32> to vector<4x16x16xf32>
    %cst_13 = arith.constant 0.127729848 : f32
    %58 = vector.broadcast %cst_13 : f32 to vector<4x16x16xf32>
    %59 = arith.mulf %58, %57 : vector<4x16x16xf32>
    %60 = arith.addf %44, %59 : vector<4x16x16xf32>
    %61 = vector.extract_strided_slice %14 {offsets = [0, 2, 0], sizes = [4, 16, 16], strides = [1, 1, 1]} : vector<4x20x16xf32> to vector<4x16x16xf32>
    %cst_14 = arith.constant 0.0572018512 : f32
    %62 = vector.broadcast %cst_14 : f32 to vector<4x16x16xf32>
    %63 = arith.mulf %62, %61 : vector<4x16x16xf32>
    %64 = arith.addf %48, %63 : vector<4x16x16xf32>
    %65 = vector.extract_strided_slice %15 {offsets = [0, 2, 0], sizes = [4, 16, 16], strides = [1, 1, 1]} : vector<4x20x16xf32> to vector<4x16x16xf32>
    %cst_15 = arith.constant -0.0354283154 : f32
    %66 = vector.broadcast %cst_15 : f32 to vector<4x16x16xf32>
    %67 = arith.mulf %66, %65 : vector<4x16x16xf32>
    %68 = arith.addf %52, %67 : vector<4x16x16xf32>
    %69 = vector.extract_strided_slice %16 {offsets = [0, 2, 0], sizes = [4, 16, 16], strides = [1, 1, 1]} : vector<4x20x16xf32> to vector<4x16x16xf32>
    %cst_16 = arith.constant -0.0354283154 : f32
    %70 = vector.broadcast %cst_16 : f32 to vector<4x16x16xf32>
    %71 = arith.mulf %70, %69 : vector<4x16x16xf32>
    %72 = arith.addf %56, %71 : vector<4x16x16xf32>
    %73 = vector.extract_strided_slice %12 {offsets = [0, 3, 0], sizes = [4, 16, 16], strides = [1, 1, 1]} : vector<4x20x16xf32> to vector<4x16x16xf32>
    %cst_17 = arith.constant -0.0354283154 : f32
    %74 = vector.broadcast %cst_17 : f32 to vector<4x16x16xf32>
    %75 = arith.mulf %74, %73 : vector<4x16x16xf32>
    %76 = arith.addf %60, %75 : vector<4x16x16xf32>
    %77 = vector.extract_strided_slice %13 {offsets = [0, 3, 0], sizes = [4, 16, 16], strides = [1, 1, 1]} : vector<4x20x16xf32> to vector<4x16x16xf32>
    %cst_18 = arith.constant -0.0209504012 : f32
    %78 = vector.broadcast %cst_18 : f32 to vector<4x16x16xf32>
    %79 = arith.mulf %78, %77 : vector<4x16x16xf32>
    %80 = arith.addf %64, %79 : vector<4x16x16xf32>
    %81 = vector.extract_strided_slice %14 {offsets = [0, 3, 0], sizes = [4, 16, 16], strides = [1, 1, 1]} : vector<4x20x16xf32> to vector<4x16x16xf32>
    %cst_19 = arith.constant -0.0354283154 : f32
    %82 = vector.broadcast %cst_19 : f32 to vector<4x16x16xf32>
    %83 = arith.mulf %82, %81 : vector<4x16x16xf32>
    %84 = arith.addf %68, %83 : vector<4x16x16xf32>
    %85 = vector.extract_strided_slice %15 {offsets = [0, 3, 0], sizes = [4, 16, 16], strides = [1, 1, 1]} : vector<4x20x16xf32> to vector<4x16x16xf32>
    %cst_20 = arith.constant -0.0498688109 : f32
    %86 = vector.broadcast %cst_20 : f32 to vector<4x16x16xf32>
    %87 = arith.mulf %86, %85 : vector<4x16x16xf32>
    %88 = arith.addf %72, %87 : vector<4x16x16xf32>
    %89 = vector.extract_strided_slice %16 {offsets = [0, 3, 0], sizes = [4, 16, 16], strides = [1, 1, 1]} : vector<4x20x16xf32> to vector<4x16x16xf32>
    %cst_21 = arith.constant -0.0498688109 : f32
    %90 = vector.broadcast %cst_21 : f32 to vector<4x16x16xf32>
    %91 = arith.mulf %90, %89 : vector<4x16x16xf32>
    %92 = arith.addf %76, %91 : vector<4x16x16xf32>
    %93 = vector.extract_strided_slice %12 {offsets = [0, 4, 0], sizes = [4, 16, 16], strides = [1, 1, 1]} : vector<4x20x16xf32> to vector<4x16x16xf32>
    %cst_22 = arith.constant -0.0354283154 : f32
    %94 = vector.broadcast %cst_22 : f32 to vector<4x16x16xf32>
    %95 = arith.mulf %94, %93 : vector<4x16x16xf32>
    %96 = arith.addf %80, %95 : vector<4x16x16xf32>
    %97 = vector.extract_strided_slice %13 {offsets = [0, 4, 0], sizes = [4, 16, 16], strides = [1, 1, 1]} : vector<4x20x16xf32> to vector<4x16x16xf32>
    %cst_23 = arith.constant -0.0209504012 : f32
    %98 = vector.broadcast %cst_23 : f32 to vector<4x16x16xf32>
    %99 = arith.mulf %98, %97 : vector<4x16x16xf32>
    %100 = arith.addf %84, %99 : vector<4x16x16xf32>
    %101 = vector.extract_strided_slice %14 {offsets = [0, 4, 0], sizes = [4, 16, 16], strides = [1, 1, 1]} : vector<4x20x16xf32> to vector<4x16x16xf32>
    %cst_24 = arith.constant -0.0354283154 : f32
    %102 = vector.broadcast %cst_24 : f32 to vector<4x16x16xf32>
    %103 = arith.mulf %102, %101 : vector<4x16x16xf32>
    %104 = arith.addf %88, %103 : vector<4x16x16xf32>
    %105 = vector.extract_strided_slice %15 {offsets = [0, 4, 0], sizes = [4, 16, 16], strides = [1, 1, 1]} : vector<4x20x16xf32> to vector<4x16x16xf32>
    %cst_25 = arith.constant -0.0498688109 : f32
    %106 = vector.broadcast %cst_25 : f32 to vector<4x16x16xf32>
    %107 = arith.mulf %106, %105 : vector<4x16x16xf32>
    %108 = arith.addf %92, %107 : vector<4x16x16xf32>
    %109 = vector.extract_strided_slice %16 {offsets = [0, 4, 0], sizes = [4, 16, 16], strides = [1, 1, 1]} : vector<4x20x16xf32> to vector<4x16x16xf32>
    %cst_26 = arith.constant -0.0498688109 : f32
    %110 = vector.broadcast %cst_26 : f32 to vector<4x16x16xf32>
    %111 = arith.mulf %110, %109 : vector<4x16x16xf32>
    %112 = arith.addf %96, %111 : vector<4x16x16xf32>
    %113 = arith.addf %112, %100 : vector<4x16x16xf32>
    %114 = arith.addf %104, %108 : vector<4x16x16xf32>
    %115 = arith.addf %113, %114 : vector<4x16x16xf32>
    %c0_27 = arith.constant 0 : index
    %c0_28 = arith.constant 0 : index
    %c0_29 = arith.constant 0 : index
    %c0_30 = arith.constant 0 : index
    %116 = vector.load %arg3[%c0_27, %c0_28, %c0_29, %c0_30] : memref<1x4x16x16xf32, #tpu.memory_space<vmem>>, vector<1x4x16x16xf32>
    %117 = vector.shape_cast %116 : vector<1x4x16x16xf32> to vector<4x16x16xf32>
    %118 = vector.shape_cast %115 : vector<4x16x16xf32> to vector<1x4x16x16xf32>
    tpu.vector_store %arg3[%c0_27, %c0_28, %c0_29, %c0_30], %118 {strides = array<i32>} : memref<1x4x16x16xf32, #tpu.memory_space<vmem>>, vector<1x4x16x16xf32>,
    return
  }
  func.func @transform_0(%arg0: i32, %arg1: i32) -> (i32, i32, i32, i32) {
    %c0_i32 = arith.constant 0 : i32
    %c0_i32_0 = arith.constant 0 : i32
    %c0_i32_1 = arith.constant 0 : i32
    return %arg0, %arg1, %c0_i32, %c0_i32_0 : i32, i32, i32, i32
  }
  func.func @transform_1(%arg0: i32, %arg1: i32) -> (i32, i32, i32, i32) {
    %c0_i32 = arith.constant 0 : i32
    %c0_i32_0 = arith.constant 0 : i32
    %c0_i32_1 = arith.constant 0 : i32
    return %arg0, %arg1, %c0_i32, %c0_i32_0 : i32, i32, i32, i32
  }
}

</mosaic_0001>

<llo_original>
// kernel: tpu_custom_call.1
$region0: #{tpu_custom_call.1}
  #allocation0 [shape = 'u32[]', space=smem, size = 0x4, offset = 0x4, fixed_abs, tag = 'smem constant byte address 0x4 - core index']
  #allocation1 [shape = 'u32[72,128]{1,0:T(1,128)}', space=vmem, size = 0x9000, scoped, tag = 'internal scratch']
  %s0 = inlined_call_operand.hbm [shape: f32[2,4,16,16], index: 0, kind: input, shape index: {}]
  %s1 = inlined_call_operand.hbm [shape: f32[2,4,16,16], index: 1, kind: output, shape index: {}]
  %s2 = sld [smem:[#allocation0]]
  $region41: #{tpu_custom_call.1} parent=0
    _
  %s4 = ssub.s32 1, %s2
  %s5 = scalar_select 0, %s4, %s2
  $region1: #{tpu_custom_call.1} parent=0
    #allocation2 [shape = 'u8[65536]{0}', space=vmem, size = 0x10000, scoped, tag = 'input window, operand 0']
    #allocation3 [shape = 's32[2]{0}', space=sflag, size = 0x8, scoped, tag = 'scoped memory for tpu_custom_call.1']
    #allocation4 [shape = 's32[2]{0}', space=sflag, size = 0x8, scoped, tag = 'scoped memory for tpu_custom_call.1']
    #allocation5 [shape = 'u8[65536]{0}', space=vmem, size = 0x10000, scoped, tag = 'output window, operand 0']
    %6 = vsyncpa [#allocation3], 0
    %s7 = scalar_lea.sflag [#allocation3], 1
    %8 = vsyncpa %s7, 0
    %9 = vsyncpa [#allocation4], 0
    %s10 = scalar_lea.sflag [#allocation4], 1
    %11 = vsyncpa %s10, 0
    loop: start=0, step=1, limit=4
    $region2: #{tpu_custom_call.1} parent=1 // loop_pre_header
      _
    $region3: #{tpu_custom_call.1} parent=1 // loop_header
      %s13 = sphi 0, %s17
      %p14 = scmp.ge.s32.totalorder %s13, 4
      %s20 = sphi 0, %s32
      %s21 = sphi 0, %s28
      %s22 = sphi 0, %s20
      %s23 = sphi 0, %s21
      %s24 = sphi 0, %s22
      %s25 = sphi 0, %s23
      %s37 = sphi 0, %s39
      %s40 = sphi 0, %s37
      %s41 = sphi 0, %s40
      %s57 = sphi 0, %s41
      %s65 = sphi 0, %s67
      %s68 = sphi 0, %s65
      %s69 = sphi 0, %s68
      %s85 = sphi 0, %s69
    $region4: #{tpu_custom_call.1} parent=1 // loop_header_branch
      %16 = sbr.rel (%p14) target = $region8
    $region5: #{tpu_custom_call.1} parent=1 // loop_body
      %s18 = ssub.s32 %s13, 1
      %s19 = ssub.s32 %s13, 2
      %s26 = sadd.s32 1, %s21
      %p27 = scmp.ge.s32.totalorder %s26, 1
      %s28 = scalar_select %p27, 0, %s26
      %s29 = sadd.s32 1, %s20
      %s30 = scalar_select %p27, %s29, %s20
      %p31 = scmp.ge.s32.totalorder %s30, 2
      %s32 = scalar_select %p31, 0, %s30
      %s33 = ssub.s32 %s20, %s32
      %s34 = ssub.s32 %s21, %s28
      %s35 = sor.u32 %s33, %s34
      %p36 = scmp.eq.s32.totalorder %s35, 0
      %s38 = sadd.s32 %s37, 1
      %s39 = scalar_select %p36, %s37, %s38
      %p42 = pneg %p36
      %p43 = scmp.eq.s32.totalorder %s13, 1
      %p44 = por %p42, %p43
      %p45 = scmp.ne.s32.totalorder %s37, %s40
      %p46 = scmp.eq.s32.totalorder %s13, 0
      %p47 = por %p45, %p46
      %p48 = scmp.ne.s32.totalorder %s37, %s40
      %p49 = scmp.eq.s32.totalorder %s18, 1
      %p50 = por %p48, %p49
      %p51 = scmp.ne.s32.totalorder %s40, %s41
      %p52 = scmp.eq.s32.totalorder %s18, 0
      %p53 = por %p51, %p52
      %p54 = scmp.ne.s32.totalorder %s40, %s41
      %p55 = scmp.eq.s32.totalorder %s19, 1
      %p56 = por %p54, %p55
      %p58 = scmp.ne.s32.totalorder %s41, %s57
      %p59 = scmp.eq.s32.totalorder %s19, 0
      %p60 = por %p58, %p59
      %s61 = ssub.s32 %s20, %s32
      %s62 = ssub.s32 %s21, %s28
      %s63 = sor.u32 %s61, %s62
      %p64 = scmp.eq.s32.totalorder %s63, 0
      %s66 = sadd.s32 %s65, 1
      %s67 = scalar_select %p64, %s65, %s66
      %p70 = pneg %p64
      %p71 = scmp.eq.s32.totalorder %s13, 1
      %p72 = por %p70, %p71
      %p73 = scmp.ne.s32.totalorder %s65, %s68
      %p74 = scmp.eq.s32.totalorder %s13, 0
      %p75 = por %p73, %p74
      %p76 = scmp.ne.s32.totalorder %s65, %s68
      %p77 = scmp.eq.s32.totalorder %s18, 1
      %p78 = por %p76, %p77
      %p79 = scmp.ne.s32.totalorder %s68, %s69
      %p80 = scmp.eq.s32.totalorder %s18, 0
      %p81 = por %p79, %p80
      %p82 = scmp.ne.s32.totalorder %s68, %s69
      %p83 = scmp.eq.s32.totalorder %s19, 1
      %p84 = por %p82, %p83
      %p86 = scmp.ne.s32.totalorder %s69, %s85
      %p87 = scmp.eq.s32.totalorder %s19, 0
      %p88 = por %p86, %p87
      %p89 = scmp.le.s32.totalorder 1, %s13
      %p90 = scmp.lt.s32.totalorder %s13, 3
      %p91 = pnand %p89, %p90
      %p92 = pneg %p91
      // Predicated region
      $region9: #{tpu_custom_call.1} parent=5 // pred_check
        _
      $region10: #{tpu_custom_call.1} parent=5 // pred_check_branch
        %94 = sbr.rel (%p91) target = $region12
      $region11: #{tpu_custom_call.1} parent=5 // pred_region
        %s95 = ssub.s32 %s13, 1
      $region12: #{tpu_custom_call.1} parent=5 // pred_fallthru
        _
      %p96 = scmp.lt.s32.totalorder %s13, 2
      // Predicated region
      $region13: #{tpu_custom_call.1} parent=5 // pred_check
        %p97 = pneg %p96
      $region14: #{tpu_custom_call.1} parent=5 // pred_check_branch
        %99 = sbr.rel (%p97) target = $region16
      $region15: #{tpu_custom_call.1} parent=5 // pred_region
        // Predicated region
        $region17: #{tpu_custom_call.1} parent=15 // pred_check
          %p100 = pneg %p47
        $region18: #{tpu_custom_call.1} parent=15 // pred_check_branch
          %102 = sbr.rel (%p100) target = $region20
        $region19: #{tpu_custom_call.1} parent=15 // pred_region
          %s103 = sand.u32 %s37, 1
          %s104 = scalar_lea.sflag [#allocation3], %s103
          %s105 = sand.u32 %s37, 1
          %s106 = smul.addr %s105, 64
          %s107 = scalar_lea.vmem [#allocation2], %s106
          %s108 = smul.u32 4, %s21
          %110 = vsyncadd %s104, 0
          %s111 = smul.addr %s108, 2
          %s112 = smul.addr %s20, 8
          %s113 = sadd.s32 %s111, %s112
          %s114 = smul.addr %s113, 8
          %s115 = scalar_lea.hbm %s0, %s114
          %s116 = sshll.u32 %s115, 4
          %s117 = int_to_ptr.hbm [resolvable:$true] %s116
          %s118 = sshll.u32 %s107, 4
          %s119 = int_to_ptr.vmem [resolvable:$true] %s118
          %124 = dma.hbm_to_vmem [thread:$0]  %s117, 1024, %s119, %s104, 128, 128, 8
        $region20: #{tpu_custom_call.1} parent=15 // pred_fallthru
          _
      $region16: #{tpu_custom_call.1} parent=5 // pred_fallthru
        _
      %p125 = scmp.le.s32.totalorder 1, %s13
      %p126 = scmp.lt.s32.totalorder %s13, 3
      %p127 = pnand %p125, %p126
      %p128 = pneg %p127
      // Predicated region
      $region21: #{tpu_custom_call.1} parent=5 // pred_check
        _
      $region22: #{tpu_custom_call.1} parent=5 // pred_check_branch
        %130 = sbr.rel (%p127) target = $region24
      $region23: #{tpu_custom_call.1} parent=5 // pred_region
        %s131 = ssub.s32 %s13, 1
        %s132 = sand.u32 %s40, 1
        %s133 = scalar_lea.sflag [#allocation3], %s132
        %s134 = sand.u32 %s40, 1
        %s135 = smul.addr %s134, 64
        %s136 = scalar_lea.vmem [#allocation2], %s135
        // Predicated region
        $region25: #{tpu_custom_call.1} parent=23 // pred_check
          %p137 = pneg %p53
        $region26: #{tpu_custom_call.1} parent=23 // pred_check_branch
          %139 = sbr.rel (%p137) target = $region28
        $region27: #{tpu_custom_call.1} parent=23 // pred_region
          %141 = dma.done %s133, 1024
        $region28: #{tpu_custom_call.1} parent=23 // pred_fallthru
          _
        %s142 = sand.u32 %s40, 1
        %s143 = scalar_lea.sflag [#allocation3], %s142
        %s144 = sand.u32 %s40, 1
        %s145 = smul.addr %s144, 64
        %s146 = scalar_lea.vmem [#allocation2], %s145
        %p147 = pneg %p53
        %p148 = pneg %p50
        %p149 = pneg %p81
        %p150 = pneg %p78
        %s151 = sand.u32 %s68, 1
        %s152 = scalar_lea.sflag [#allocation4], %s151
        %s153 = sand.u32 %s68, 1
        %s154 = smul.addr %s153, 64
        %s155 = scalar_lea.vmem [#allocation5], %s154
        %s156 = smul.u32 4, %s23
        %s157 = smul.u32 4, %s23
        %v158 = vld [vmem:[%s136] sm:$0xff]
        %v159 = vld [vmem:[%s136 + $0x8] sm:$0xff]
        %v160 = vld [vmem:[%s136 + $0x10] sm:$0xff]
        %v161 = vld [vmem:[%s136 + $0x18] sm:$0xff]
        %v162 = vld [vmem:[%s136 + $0x20] sm:$0xff]
        %v163 = vld [vmem:[%s136 + $0x28] sm:$0xff]
        %v164 = vld [vmem:[%s136 + $0x30] sm:$0xff]
        %v165 = vld [vmem:[%s136 + $0x38] sm:$0xff]
        %v170 = vrot.slane %v158, 2
        %v171 = vrot.slane %v160, 2
        %v172 = vrot.slane %v162, 2
        %v173 = vrot.slane %v164, 2
        %vm182 = vcmask 1041408
        %v183 = vrot.slane %v158, 6
        %v184 = vrot.slane %v159, 6
        %v185 = vsel %vm182, %v183, %v184
        %v186 = vrot.slane %v160, 6
        %v187 = vrot.slane %v161, 6
        %v188 = vsel %vm182, %v186, %v187
        %v189 = vrot.slane %v162, 6
        %v190 = vrot.slane %v163, 6
        %v191 = vsel %vm182, %v189, %v190
        %v192 = vrot.slane %v164, 6
        %v193 = vrot.slane %v165, 6
        %v194 = vsel %vm182, %v192, %v193
        %v207 = vrot.slane %v159, 4
        %v208 = vrot.slane %v161, 4
        %v209 = vrot.slane %v163, 4
        %v210 = vrot.slane %v165, 4
        %v215 = vrot.slane %v159, 2
        %v216 = vrot.slane %v161, 2
        %v217 = vrot.slane %v163, 2
        %v218 = vrot.slane %v165, 2
        %vm223 = vcmask 1040384
        %v224 = vsel %vm223, %v170, %v158
        %v225 = vsel %vm223, %v171, %v160
        %v226 = vsel %vm223, %v172, %v162
        %v227 = vsel %vm223, %v173, %v164
        %v228 = vsel %vm182, %v224, %v183
        %v229 = vsel %vm182, %v225, %v186
        %v230 = vsel %vm182, %v226, %v189
        %v231 = vsel %vm182, %v227, %v192
        %v232 = vsel %vm182, %v184, %v207
        %v233 = vsel %vm182, %v187, %v208
        %v234 = vsel %vm182, %v190, %v209
        %v235 = vsel %vm182, %v193, %v210
        %vm236 = vcmask 1042432
        %v237 = vsel %vm236, %v232, %v215
        %v238 = vsel %vm236, %v233, %v216
        %v239 = vsel %vm236, %v234, %v217
        %v240 = vsel %vm236, %v235, %v218
        %249 = vrot.lane.b32.xlu0 %v228, 126
        %v250 = vpop.permute.xlu0 %249
        %251 = vrot.lane.b32.xlu0 %v185, 126
        %v252 = vpop.permute.xlu0 %251
        %253 = vrot.lane.b32.xlu0 %v237, 126
        %v254 = vpop.permute.xlu0 %253
        %255 = vrot.lane.b32.xlu0 %v229, 126
        %v256 = vpop.permute.xlu0 %255
        %257 = vrot.lane.b32.xlu0 %v188, 126
        %v258 = vpop.permute.xlu0 %257
        %259 = vrot.lane.b32.xlu0 %v238, 126
        %v260 = vpop.permute.xlu0 %259
        %261 = vrot.lane.b32.xlu0 %v230, 126
        %v262 = vpop.permute.xlu0 %261
        %263 = vrot.lane.b32.xlu0 %v191, 126
        %v264 = vpop.permute.xlu0 %263
        %265 = vrot.lane.b32.xlu0 %v239, 126
        %v266 = vpop.permute.xlu0 %265
        %267 = vrot.lane.b32.xlu0 %v231, 126
        %v268 = vpop.permute.xlu0 %267
        %269 = vrot.lane.b32.xlu0 %v194, 126
        %v270 = vpop.permute.xlu0 %269
        %271 = vrot.lane.b32.xlu0 %v240, 126
        %v272 = vpop.permute.xlu0 %271
        %285 = vrot.lane.b32.xlu0 %v228, 2
        %v286 = vpop.permute.xlu0 %285
        %287 = vrot.lane.b32.xlu0 %v185, 2
        %v288 = vpop.permute.xlu0 %287
        %289 = vrot.lane.b32.xlu0 %v237, 2
        %v290 = vpop.permute.xlu0 %289
        %291 = vrot.lane.b32.xlu0 %v229, 2
        %v292 = vpop.permute.xlu0 %291
        %293 = vrot.lane.b32.xlu0 %v188, 2
        %v294 = vpop.permute.xlu0 %293
        %295 = vrot.lane.b32.xlu0 %v238, 2
        %v296 = vpop.permute.xlu0 %295
        %297 = vrot.lane.b32.xlu0 %v230, 2
        %v298 = vpop.permute.xlu0 %297
        %299 = vrot.lane.b32.xlu0 %v191, 2
        %v300 = vpop.permute.xlu0 %299
        %301 = vrot.lane.b32.xlu0 %v239, 2
        %v302 = vpop.permute.xlu0 %301
        %303 = vrot.lane.b32.xlu0 %v231, 2
        %v304 = vpop.permute.xlu0 %303
        %305 = vrot.lane.b32.xlu0 %v194, 2
        %v306 = vpop.permute.xlu0 %305
        %307 = vrot.lane.b32.xlu0 %v240, 2
        %v308 = vpop.permute.xlu0 %307
        %321 = vrot.lane.b32.xlu0 %v228, 4
        %v322 = vpop.permute.xlu0 %321
        %323 = vrot.lane.b32.xlu0 %v185, 4
        %v324 = vpop.permute.xlu0 %323
        %325 = vrot.lane.b32.xlu0 %v237, 4
        %v326 = vpop.permute.xlu0 %325
        %327 = vrot.lane.b32.xlu0 %v229, 4
        %v328 = vpop.permute.xlu0 %327
        %329 = vrot.lane.b32.xlu0 %v188, 4
        %v330 = vpop.permute.xlu0 %329
        %331 = vrot.lane.b32.xlu0 %v238, 4
        %v332 = vpop.permute.xlu0 %331
        %333 = vrot.lane.b32.xlu0 %v230, 4
        %v334 = vpop.permute.xlu0 %333
        %335 = vrot.lane.b32.xlu0 %v191, 4
        %v336 = vpop.permute.xlu0 %335
        %337 = vrot.lane.b32.xlu0 %v239, 4
        %v338 = vpop.permute.xlu0 %337
        %339 = vrot.lane.b32.xlu0 %v231, 4
        %v340 = vpop.permute.xlu0 %339
        %341 = vrot.lane.b32.xlu0 %v194, 4
        %v342 = vpop.permute.xlu0 %341
        %343 = vrot.lane.b32.xlu0 %v240, 4
        %v344 = vpop.permute.xlu0 %343
        %357 = vrot.lane.b32.xlu0 %v228, 6
        %v358 = vpop.permute.xlu0 %357
        %359 = vrot.lane.b32.xlu0 %v185, 6
        %v360 = vpop.permute.xlu0 %359
        %361 = vrot.lane.b32.xlu0 %v237, 6
        %v362 = vpop.permute.xlu0 %361
        %363 = vrot.lane.b32.xlu0 %v229, 6
        %v364 = vpop.permute.xlu0 %363
        %365 = vrot.lane.b32.xlu0 %v188, 6
        %v366 = vpop.permute.xlu0 %365
        %367 = vrot.lane.b32.xlu0 %v238, 6
        %v368 = vpop.permute.xlu0 %367
        %369 = vrot.lane.b32.xlu0 %v230, 6
        %v370 = vpop.permute.xlu0 %369
        %371 = vrot.lane.b32.xlu0 %v191, 6
        %v372 = vpop.permute.xlu0 %371
        %373 = vrot.lane.b32.xlu0 %v239, 6
        %v374 = vpop.permute.xlu0 %373
        %375 = vrot.lane.b32.xlu0 %v231, 6
        %v376 = vpop.permute.xlu0 %375
        %377 = vrot.lane.b32.xlu0 %v194, 6
        %v378 = vpop.permute.xlu0 %377
        %379 = vrot.lane.b32.xlu0 %v240, 6
        %v380 = vpop.permute.xlu0 %379
        %vm393 = vcmask 7168
        %v394 = vsel %vm393, %v250, %v228
        %v395 = vsel %vm393, %v252, %v185
        %v396 = vsel %vm393, %v254, %v237
        %v397 = vsel %vm393, %v256, %v229
        %v398 = vsel %vm393, %v258, %v188
        %v399 = vsel %vm393, %v260, %v238
        %v400 = vsel %vm393, %v262, %v230
        %v401 = vsel %vm393, %v264, %v191
        %v402 = vsel %vm393, %v266, %v239
        %v403 = vsel %vm393, %v268, %v231
        %v404 = vsel %vm393, %v270, %v194
        %v405 = vsel %vm393, %v272, %v240
        %vm406 = vcmask 15360
        %v407 = vsel %vm406, %v394, %v286
        %v408 = vsel %vm406, %v395, %v288
        %v409 = vsel %vm406, %v396, %v290
        %v410 = vsel %vm406, %v397, %v292
        %v411 = vsel %vm406, %v398, %v294
        %v412 = vsel %vm406, %v399, %v296
        %v413 = vsel %vm406, %v400, %v298
        %v414 = vsel %vm406, %v401, %v300
        %v415 = vsel %vm406, %v402, %v302
        %v416 = vsel %vm406, %v403, %v304
        %v417 = vsel %vm406, %v404, %v306
        %v418 = vsel %vm406, %v405, %v308
        %vm419 = vcmask 146432
        %v420 = vsel %vm419, %v407, %v322
        %v421 = vsel %vm419, %v408, %v324
        %v422 = vsel %vm419, %v409, %v326
        %v423 = vsel %vm419, %v410, %v328
        %v424 = vsel %vm419, %v411, %v330
        %v425 = vsel %vm419, %v412, %v332
        %v426 = vsel %vm419, %v413, %v334
        %v427 = vsel %vm419, %v414, %v336
        %v428 = vsel %vm419, %v415, %v338
        %v429 = vsel %vm419, %v416, %v340
        %v430 = vsel %vm419, %v417, %v342
        %v431 = vsel %vm419, %v418, %v344
        %vm432 = vcmask 154624
        %v433 = vsel %vm432, %v420, %v358
        %v434 = vsel %vm432, %v421, %v360
        %v435 = vsel %vm432, %v422, %v362
        %v436 = vsel %vm432, %v423, %v364
        %v437 = vsel %vm432, %v424, %v366
        %v438 = vsel %vm432, %v425, %v368
        %v439 = vsel %vm432, %v426, %v370
        %v440 = vsel %vm432, %v427, %v372
        %v441 = vsel %vm432, %v428, %v374
        %v442 = vsel %vm432, %v429, %v376
        %v443 = vsel %vm432, %v430, %v378
        %v444 = vsel %vm432, %v431, %v380
        %v445 = vmul.f32 %v433, 0.05720185
        %v446 = vmul.f32 %v434, 0.05720185
        %v447 = vmul.f32 %v436, 0.05720185
        %v448 = vmul.f32 %v437, 0.05720185
        %v449 = vmul.f32 %v439, 0.05720185
        %v450 = vmul.f32 %v440, 0.05720185
        %v451 = vmul.f32 %v442, 0.05720185
        %v452 = vmul.f32 %v443, 0.05720185
        %v453 = vmul.f32 %v433, 0.12772985
        %v454 = vmul.f32 %v434, 0.12772985
        %v455 = vmul.f32 %v436, 0.12772985
        %v456 = vmul.f32 %v437, 0.12772985
        %v457 = vmul.f32 %v439, 0.12772985
        %v458 = vmul.f32 %v440, 0.12772985
        %v459 = vmul.f32 %v442, 0.12772985
        %v460 = vmul.f32 %v443, 0.12772985
        %v461 = vmul.f32 %v433, -0.035428315
        %v462 = vmul.f32 %v434, -0.035428315
        %v463 = vmul.f32 %v436, -0.035428315
        %v464 = vmul.f32 %v437, -0.035428315
        %v465 = vmul.f32 %v439, -0.035428315
        %v466 = vmul.f32 %v440, -0.035428315
        %v467 = vmul.f32 %v442, -0.035428315
        %v468 = vmul.f32 %v443, -0.035428315
        %477 = vrot.lane.b32.xlu0 %v461, 124
        %v478 = vpop.permute.xlu0 %477
        %479 = vrot.lane.b32.xlu0 %v462, 124
        %v480 = vpop.permute.xlu0 %479
        %481 = vrot.lane.b32.xlu0 %v463, 124
        %v482 = vpop.permute.xlu0 %481
        %483 = vrot.lane.b32.xlu0 %v464, 124
        %v484 = vpop.permute.xlu0 %483
        %485 = vrot.lane.b32.xlu0 %v465, 124
        %v486 = vpop.permute.xlu0 %485
        %487 = vrot.lane.b32.xlu0 %v466, 124
        %v488 = vpop.permute.xlu0 %487
        %489 = vrot.lane.b32.xlu0 %v467, 124
        %v490 = vpop.permute.xlu0 %489
        %491 = vrot.lane.b32.xlu0 %v468, 124
        %v492 = vpop.permute.xlu0 %491
        %v501 = vadd.f32 %v445, %v478
        %v502 = vadd.f32 %v446, %v480
        %v503 = vadd.f32 %v447, %v482
        %v504 = vadd.f32 %v448, %v484
        %v505 = vadd.f32 %v449, %v486
        %v506 = vadd.f32 %v450, %v488
        %v507 = vadd.f32 %v451, %v490
        %v508 = vadd.f32 %v452, %v492
        %v509 = vmul.f32 %v435, 0.12772985
        %v510 = vmul.f32 %v438, 0.12772985
        %v511 = vmul.f32 %v441, 0.12772985
        %v512 = vmul.f32 %v444, 0.12772985
        %vm525 = vcmask 1046528
        %v526 = vrot.slane %v453, 1
        %v527 = vrot.slane %v454, 1
        %v528 = vsel %vm525, %v526, %v527
        %v529 = vrot.slane %v509, 1
        %v530 = vsel %vm525, %v527, %v529
        %v531 = vrot.slane %v455, 1
        %v532 = vrot.slane %v456, 1
        %v533 = vsel %vm525, %v531, %v532
        %v534 = vrot.slane %v510, 1
        %v535 = vsel %vm525, %v532, %v534
        %v536 = vrot.slane %v457, 1
        %v537 = vrot.slane %v458, 1
        %v538 = vsel %vm525, %v536, %v537
        %v539 = vrot.slane %v511, 1
        %v540 = vsel %vm525, %v537, %v539
        %v541 = vrot.slane %v459, 1
        %v542 = vrot.slane %v460, 1
        %v543 = vsel %vm525, %v541, %v542
        %v544 = vrot.slane %v512, 1
        %v545 = vsel %vm525, %v542, %v544
        %546 = vrot.lane.b32.xlu0 %v528, 1
        %v547 = vpop.permute.xlu0 %546
        %548 = vrot.lane.b32.xlu0 %v530, 1
        %v549 = vpop.permute.xlu0 %548
        %550 = vrot.lane.b32.xlu0 %v533, 1
        %v551 = vpop.permute.xlu0 %550
        %552 = vrot.lane.b32.xlu0 %v535, 1
        %v553 = vpop.permute.xlu0 %552
        %554 = vrot.lane.b32.xlu0 %v538, 1
        %v555 = vpop.permute.xlu0 %554
        %556 = vrot.lane.b32.xlu0 %v540, 1
        %v557 = vpop.permute.xlu0 %556
        %558 = vrot.lane.b32.xlu0 %v543, 1
        %v559 = vpop.permute.xlu0 %558
        %560 = vrot.lane.b32.xlu0 %v545, 1
        %v561 = vpop.permute.xlu0 %560
        %v570 = vadd.f32 %v453, %v547
        %v571 = vadd.f32 %v454, %v549
        %v572 = vadd.f32 %v455, %v551
        %v573 = vadd.f32 %v456, %v553
        %v574 = vadd.f32 %v457, %v555
        %v575 = vadd.f32 %v458, %v557
        %v576 = vadd.f32 %v459, %v559
        %v577 = vadd.f32 %v460, %v561
        %v578 = vmul.f32 %v433, 0.23808886
        %v579 = vmul.f32 %v434, 0.23808886
        %v580 = vmul.f32 %v435, 0.23808886
        %v581 = vmul.f32 %v436, 0.23808886
        %v582 = vmul.f32 %v437, 0.23808886
        %v583 = vmul.f32 %v438, 0.23808886
        %v584 = vmul.f32 %v439, 0.23808886
        %v585 = vmul.f32 %v440, 0.23808886
        %v586 = vmul.f32 %v441, 0.23808886
        %v587 = vmul.f32 %v442, 0.23808886
        %v588 = vmul.f32 %v443, 0.23808886
        %v589 = vmul.f32 %v444, 0.23808886
        %v602 = vrot.slane %v578, 1
        %v603 = vrot.slane %v579, 1
        %v604 = vsel %vm525, %v602, %v603
        %v605 = vrot.slane %v580, 1
        %v606 = vsel %vm525, %v603, %v605
        %v607 = vrot.slane %v581, 1
        %v608 = vrot.slane %v582, 1
        %v609 = vsel %vm525, %v607, %v608
        %v610 = vrot.slane %v583, 1
        %v611 = vsel %vm525, %v608, %v610
        %v612 = vrot.slane %v584, 1
        %v613 = vrot.slane %v585, 1
        %v614 = vsel %vm525, %v612, %v613
        %v615 = vrot.slane %v586, 1
        %v616 = vsel %vm525, %v613, %v615
        %v617 = vrot.slane %v587, 1
        %v618 = vrot.slane %v588, 1
        %v619 = vsel %vm525, %v617, %v618
        %v620 = vrot.slane %v589, 1
        %v621 = vsel %vm525, %v618, %v620
        %622 = vrot.lane.b32.xlu0 %v604, 1
        %v623 = vpop.permute.xlu0 %622
        %624 = vrot.lane.b32.xlu0 %v606, 1
        %v625 = vpop.permute.xlu0 %624
        %626 = vrot.lane.b32.xlu0 %v609, 1
        %v627 = vpop.permute.xlu0 %626
        %628 = vrot.lane.b32.xlu0 %v611, 1
        %v629 = vpop.permute.xlu0 %628
        %630 = vrot.lane.b32.xlu0 %v614, 1
        %v631 = vpop.permute.xlu0 %630
        %632 = vrot.lane.b32.xlu0 %v616, 1
        %v633 = vpop.permute.xlu0 %632
        %634 = vrot.lane.b32.xlu0 %v619, 1
        %v635 = vpop.permute.xlu0 %634
        %636 = vrot.lane.b32.xlu0 %v621, 1
        %v637 = vpop.permute.xlu0 %636
        %v646 = vadd.f32 %v445, %v623
        %v647 = vadd.f32 %v446, %v625
        %v648 = vadd.f32 %v447, %v627
        %v649 = vadd.f32 %v448, %v629
        %v650 = vadd.f32 %v449, %v631
        %v651 = vadd.f32 %v450, %v633
        %v652 = vadd.f32 %v451, %v635
        %v653 = vadd.f32 %v452, %v637
        %v654 = vadd.f32 %v461, %v547
        %v655 = vadd.f32 %v462, %v549
        %v656 = vadd.f32 %v463, %v551
        %v657 = vadd.f32 %v464, %v553
        %v658 = vadd.f32 %v465, %v555
        %v659 = vadd.f32 %v466, %v557
        %v660 = vadd.f32 %v467, %v559
        %v661 = vadd.f32 %v468, %v561
        %v662 = vmul.f32 %v433, -0.020950401
        %v663 = vmul.f32 %v434, -0.020950401
        %v664 = vmul.f32 %v435, -0.020950401
        %v665 = vmul.f32 %v436, -0.020950401
        %v666 = vmul.f32 %v437, -0.020950401
        %v667 = vmul.f32 %v438, -0.020950401
        %v668 = vmul.f32 %v439, -0.020950401
        %v669 = vmul.f32 %v440, -0.020950401
        %v670 = vmul.f32 %v441, -0.020950401
        %v671 = vmul.f32 %v442, -0.020950401
        %v672 = vmul.f32 %v443, -0.020950401
        %v673 = vmul.f32 %v444, -0.020950401
        %v686 = vrot.slane %v662, 1
        %v687 = vrot.slane %v663, 1
        %v688 = vsel %vm525, %v686, %v687
        %v689 = vrot.slane %v664, 1
        %v690 = vsel %vm525, %v687, %v689
        %v691 = vrot.slane %v665, 1
        %v692 = vrot.slane %v666, 1
        %v693 = vsel %vm525, %v691, %v692
        %v694 = vrot.slane %v667, 1
        %v695 = vsel %vm525, %v692, %v694
        %v696 = vrot.slane %v668, 1
        %v697 = vrot.slane %v669, 1
        %v698 = vsel %vm525, %v696, %v697
        %v699 = vrot.slane %v670, 1
        %v700 = vsel %vm525, %v697, %v699
        %v701 = vrot.slane %v671, 1
        %v702 = vrot.slane %v672, 1
        %v703 = vsel %vm525, %v701, %v702
        %v704 = vrot.slane %v673, 1
        %v705 = vsel %vm525, %v702, %v704
        %706 = vrot.lane.b32.xlu0 %v688, 125
        %v707 = vpop.permute.xlu0 %706
        %708 = vrot.lane.b32.xlu0 %v690, 125
        %v709 = vpop.permute.xlu0 %708
        %710 = vrot.lane.b32.xlu0 %v693, 125
        %v711 = vpop.permute.xlu0 %710
        %712 = vrot.lane.b32.xlu0 %v695, 125
        %v713 = vpop.permute.xlu0 %712
        %714 = vrot.lane.b32.xlu0 %v698, 125
        %v715 = vpop.permute.xlu0 %714
        %716 = vrot.lane.b32.xlu0 %v700, 125
        %v717 = vpop.permute.xlu0 %716
        %718 = vrot.lane.b32.xlu0 %v703, 125
        %v719 = vpop.permute.xlu0 %718
        %720 = vrot.lane.b32.xlu0 %v705, 125
        %v721 = vpop.permute.xlu0 %720
        %v730 = vadd.f32 %v501, %v707
        %v731 = vadd.f32 %v502, %v709
        %v732 = vadd.f32 %v503, %v711
        %v733 = vadd.f32 %v504, %v713
        %v734 = vadd.f32 %v505, %v715
        %v735 = vadd.f32 %v506, %v717
        %v736 = vadd.f32 %v507, %v719
        %v737 = vadd.f32 %v508, %v721
        %v738 = vadd.f32 %v570, %v707
        %v739 = vadd.f32 %v571, %v709
        %v740 = vadd.f32 %v572, %v711
        %v741 = vadd.f32 %v573, %v713
        %v742 = vadd.f32 %v574, %v715
        %v743 = vadd.f32 %v575, %v717
        %v744 = vadd.f32 %v576, %v719
        %v745 = vadd.f32 %v577, %v721
        %v746 = vmul.f32 %v435, 0.05720185
        %v747 = vmul.f32 %v438, 0.05720185
        %v748 = vmul.f32 %v441, 0.05720185
        %v749 = vmul.f32 %v444, 0.05720185
        %vm762 = vcmask 1045504
        %v763 = vrot.slane %v445, 2
        %v764 = vrot.slane %v446, 2
        %v765 = vsel %vm762, %v763, %v764
        %v766 = vrot.slane %v746, 2
        %v767 = vsel %vm762, %v764, %v766
        %v768 = vrot.slane %v447, 2
        %v769 = vrot.slane %v448, 2
        %v770 = vsel %vm762, %v768, %v769
        %v771 = vrot.slane %v747, 2
        %v772 = vsel %vm762, %v769, %v771
        %v773 = vrot.slane %v449, 2
        %v774 = vrot.slane %v450, 2
        %v775 = vsel %vm762, %v773, %v774
        %v776 = vrot.slane %v748, 2
        %v777 = vsel %vm762, %v774, %v776
        %v778 = vrot.slane %v451, 2
        %v779 = vrot.slane %v452, 2
        %v780 = vsel %vm762, %v778, %v779
        %v781 = vrot.slane %v749, 2
        %v782 = vsel %vm762, %v779, %v781
        %783 = vrot.lane.b32.xlu0 %v765, 2
        %v784 = vpop.permute.xlu0 %783
        %785 = vrot.lane.b32.xlu0 %v767, 2
        %v786 = vpop.permute.xlu0 %785
        %787 = vrot.lane.b32.xlu0 %v770, 2
        %v788 = vpop.permute.xlu0 %787
        %789 = vrot.lane.b32.xlu0 %v772, 2
        %v790 = vpop.permute.xlu0 %789
        %791 = vrot.lane.b32.xlu0 %v775, 2
        %v792 = vpop.permute.xlu0 %791
        %793 = vrot.lane.b32.xlu0 %v777, 2
        %v794 = vpop.permute.xlu0 %793
        %795 = vrot.lane.b32.xlu0 %v780, 2
        %v796 = vpop.permute.xlu0 %795
        %797 = vrot.lane.b32.xlu0 %v782, 2
        %v798 = vpop.permute.xlu0 %797
        %v807 = vadd.f32 %v646, %v784
        %v808 = vadd.f32 %v647, %v786
        %v809 = vadd.f32 %v648, %v788
        %v810 = vadd.f32 %v649, %v790
        %v811 = vadd.f32 %v650, %v792
        %v812 = vadd.f32 %v651, %v794
        %v813 = vadd.f32 %v652, %v796
        %v814 = vadd.f32 %v653, %v798
        %v815 = vrot.slane %v453, 2
        %v816 = vrot.slane %v454, 2
        %v817 = vsel %vm762, %v815, %v816
        %v818 = vrot.slane %v509, 2
        %v819 = vsel %vm762, %v816, %v818
        %v820 = vrot.slane %v455, 2
        %v821 = vrot.slane %v456, 2
        %v822 = vsel %vm762, %v820, %v821
        %v823 = vrot.slane %v510, 2
        %v824 = vsel %vm762, %v821, %v823
        %v825 = vrot.slane %v457, 2
        %v826 = vrot.slane %v458, 2
        %v827 = vsel %vm762, %v825, %v826
        %v828 = vrot.slane %v511, 2
        %v829 = vsel %vm762, %v826, %v828
        %v830 = vrot.slane %v459, 2
        %v831 = vrot.slane %v460, 2
        %v832 = vsel %vm762, %v830, %v831
        %v833 = vrot.slane %v512, 2
        %v834 = vsel %vm762, %v831, %v833
        %835 = vrot.lane.b32.xlu0 %v817, 2
        %v836 = vpop.permute.xlu0 %835
        %837 = vrot.lane.b32.xlu0 %v819, 2
        %v838 = vpop.permute.xlu0 %837
        %839 = vrot.lane.b32.xlu0 %v822, 2
        %v840 = vpop.permute.xlu0 %839
        %841 = vrot.lane.b32.xlu0 %v824, 2
        %v842 = vpop.permute.xlu0 %841
        %843 = vrot.lane.b32.xlu0 %v827, 2
        %v844 = vpop.permute.xlu0 %843
        %845 = vrot.lane.b32.xlu0 %v829, 2
        %v846 = vpop.permute.xlu0 %845
        %847 = vrot.lane.b32.xlu0 %v832, 2
        %v848 = vpop.permute.xlu0 %847
        %849 = vrot.lane.b32.xlu0 %v834, 2
        %v850 = vpop.permute.xlu0 %849
        %v859 = vadd.f32 %v654, %v836
        %v860 = vadd.f32 %v655, %v838
        %v861 = vadd.f32 %v656, %v840
        %v862 = vadd.f32 %v657, %v842
        %v863 = vadd.f32 %v658, %v844
        %v864 = vadd.f32 %v659, %v846
        %v865 = vadd.f32 %v660, %v848
        %v866 = vadd.f32 %v661, %v850
        %867 = vrot.lane.b32.xlu0 %v765, 126
        %v868 = vpop.permute.xlu0 %867
        %869 = vrot.lane.b32.xlu0 %v767, 126
        %v870 = vpop.permute.xlu0 %869
        %871 = vrot.lane.b32.xlu0 %v770, 126
        %v872 = vpop.permute.xlu0 %871
        %873 = vrot.lane.b32.xlu0 %v772, 126
        %v874 = vpop.permute.xlu0 %873
        %875 = vrot.lane.b32.xlu0 %v775, 126
        %v876 = vpop.permute.xlu0 %875
        %877 = vrot.lane.b32.xlu0 %v777, 126
        %v878 = vpop.permute.xlu0 %877
        %879 = vrot.lane.b32.xlu0 %v780, 126
        %v880 = vpop.permute.xlu0 %879
        %881 = vrot.lane.b32.xlu0 %v782, 126
        %v882 = vpop.permute.xlu0 %881
        %v891 = vadd.f32 %v730, %v868
        %v892 = vadd.f32 %v731, %v870
        %v893 = vadd.f32 %v732, %v872
        %v894 = vadd.f32 %v733, %v874
        %v895 = vadd.f32 %v734, %v876
        %v896 = vadd.f32 %v735, %v878
        %v897 = vadd.f32 %v736, %v880
        %v898 = vadd.f32 %v737, %v882
        %v899 = vmul.f32 %v435, -0.035428315
        %v900 = vmul.f32 %v438, -0.035428315
        %v901 = vmul.f32 %v441, -0.035428315
        %v902 = vmul.f32 %v444, -0.035428315
        %v907 = vrot.slane %v461, 2
        %v908 = vrot.slane %v462, 2
        %v909 = vsel %vm762, %v907, %v908
        %v910 = vrot.slane %v899, 2
        %v911 = vsel %vm762, %v908, %v910
        %v912 = vrot.slane %v463, 2
        %v913 = vrot.slane %v464, 2
        %v914 = vsel %vm762, %v912, %v913
        %v915 = vrot.slane %v900, 2
        %v916 = vsel %vm762, %v913, %v915
        %v917 = vrot.slane %v465, 2
        %v918 = vrot.slane %v466, 2
        %v919 = vsel %vm762, %v917, %v918
        %v920 = vrot.slane %v901, 2
        %v921 = vsel %vm762, %v918, %v920
        %v922 = vrot.slane %v467, 2
        %v923 = vrot.slane %v468, 2
        %v924 = vsel %vm762, %v922, %v923
        %v925 = vrot.slane %v902, 2
        %v926 = vsel %vm762, %v923, %v925
        %927 = vrot.lane.b32.xlu0 %v909, 126
        %v928 = vpop.permute.xlu0 %927
        %929 = vrot.lane.b32.xlu0 %v911, 126
        %v930 = vpop.permute.xlu0 %929
        %931 = vrot.lane.b32.xlu0 %v914, 126
        %v932 = vpop.permute.xlu0 %931
        %933 = vrot.lane.b32.xlu0 %v916, 126
        %v934 = vpop.permute.xlu0 %933
        %935 = vrot.lane.b32.xlu0 %v919, 126
        %v936 = vpop.permute.xlu0 %935
        %937 = vrot.lane.b32.xlu0 %v921, 126
        %v938 = vpop.permute.xlu0 %937
        %939 = vrot.lane.b32.xlu0 %v924, 126
        %v940 = vpop.permute.xlu0 %939
        %941 = vrot.lane.b32.xlu0 %v926, 126
        %v942 = vpop.permute.xlu0 %941
        %v951 = vadd.f32 %v738, %v928
        %v952 = vadd.f32 %v739, %v930
        %v953 = vadd.f32 %v740, %v932
        %v954 = vadd.f32 %v741, %v934
        %v955 = vadd.f32 %v742, %v936
        %v956 = vadd.f32 %v743, %v938
        %v957 = vadd.f32 %v744, %v940
        %v958 = vadd.f32 %v745, %v942
        %v959 = vadd.f32 %v807, %v928
        %v960 = vadd.f32 %v808, %v930
        %v961 = vadd.f32 %v809, %v932
        %v962 = vadd.f32 %v810, %v934
        %v963 = vadd.f32 %v811, %v936
        %v964 = vadd.f32 %v812, %v938
        %v965 = vadd.f32 %v813, %v940
        %v966 = vadd.f32 %v814, %v942
        %vm967 = vcmask 1044480
        %v968 = vrot.slane %v461, 3
        %v969 = vrot.slane %v462, 3
        %v970 = vsel %vm967, %v968, %v969
        %v971 = vrot.slane %v899, 3
        %v972 = vsel %vm967, %v969, %v971
        %v973 = vrot.slane %v463, 3
        %v974 = vrot.slane %v464, 3
        %v975 = vsel %vm967, %v973, %v974
        %v976 = vrot.slane %v900, 3
        %v977 = vsel %vm967, %v974, %v976
        %v978 = vrot.slane %v465, 3
        %v979 = vrot.slane %v466, 3
        %v980 = vsel %vm967, %v978, %v979
        %v981 = vrot.slane %v901, 3
        %v982 = vsel %vm967, %v979, %v981
        %v983 = vrot.slane %v467, 3
        %v984 = vrot.slane %v468, 3
        %v985 = vsel %vm967, %v983, %v984
        %v986 = vrot.slane %v902, 3
        %v987 = vsel %vm967, %v984, %v986
        %988 = vrot.lane.b32.xlu0 %v970, 3
        %v989 = vpop.permute.xlu0 %988
        %990 = vrot.lane.b32.xlu0 %v972, 3
        %v991 = vpop.permute.xlu0 %990
        %992 = vrot.lane.b32.xlu0 %v975, 3
        %v993 = vpop.permute.xlu0 %992
        %994 = vrot.lane.b32.xlu0 %v977, 3
        %v995 = vpop.permute.xlu0 %994
        %996 = vrot.lane.b32.xlu0 %v980, 3
        %v997 = vpop.permute.xlu0 %996
        %998 = vrot.lane.b32.xlu0 %v982, 3
        %v999 = vpop.permute.xlu0 %998
        %1000 = vrot.lane.b32.xlu0 %v985, 3
        %v1001 = vpop.permute.xlu0 %1000
        %1002 = vrot.lane.b32.xlu0 %v987, 3
        %v1003 = vpop.permute.xlu0 %1002
        %v1012 = vadd.f32 %v859, %v989
        %v1013 = vadd.f32 %v860, %v991
        %v1014 = vadd.f32 %v861, %v993
        %v1015 = vadd.f32 %v862, %v995
        %v1016 = vadd.f32 %v863, %v997
        %v1017 = vadd.f32 %v864, %v999
        %v1018 = vadd.f32 %v865, %v1001
        %v1019 = vadd.f32 %v866, %v1003
        %v1020 = vrot.slane %v662, 3
        %v1021 = vrot.slane %v663, 3
        %v1022 = vsel %vm967, %v1020, %v1021
        %v1023 = vrot.slane %v664, 3
        %v1024 = vsel %vm967, %v1021, %v1023
        %v1025 = vrot.slane %v665, 3
        %v1026 = vrot.slane %v666, 3
        %v1027 = vsel %vm967, %v1025, %v1026
        %v1028 = vrot.slane %v667, 3
        %v1029 = vsel %vm967, %v1026, %v1028
        %v1030 = vrot.slane %v668, 3
        %v1031 = vrot.slane %v669, 3
        %v1032 = vsel %vm967, %v1030, %v1031
        %v1033 = vrot.slane %v670, 3
        %v1034 = vsel %vm967, %v1031, %v1033
        %v1035 = vrot.slane %v671, 3
        %v1036 = vrot.slane %v672, 3
        %v1037 = vsel %vm967, %v1035, %v1036
        %v1038 = vrot.slane %v673, 3
        %v1039 = vsel %vm967, %v1036, %v1038
        %1040 = vrot.lane.b32.xlu0 %v1022, 127
        %v1041 = vpop.permute.xlu0 %1040
        %1042 = vrot.lane.b32.xlu0 %v1024, 127
        %v1043 = vpop.permute.xlu0 %1042
        %1044 = vrot.lane.b32.xlu0 %v1027, 127
        %v1045 = vpop.permute.xlu0 %1044
        %1046 = vrot.lane.b32.xlu0 %v1029, 127
        %v1047 = vpop.permute.xlu0 %1046
        %1048 = vrot.lane.b32.xlu0 %v1032, 127
        %v1049 = vpop.permute.xlu0 %1048
        %1050 = vrot.lane.b32.xlu0 %v1034, 127
        %v1051 = vpop.permute.xlu0 %1050
        %1052 = vrot.lane.b32.xlu0 %v1037, 127
        %v1053 = vpop.permute.xlu0 %1052
        %1054 = vrot.lane.b32.xlu0 %v1039, 127
        %v1055 = vpop.permute.xlu0 %1054
        %v1064 = vadd.f32 %v891, %v1041
        %v1065 = vadd.f32 %v892, %v1043
        %v1066 = vadd.f32 %v893, %v1045
        %v1067 = vadd.f32 %v894, %v1047
        %v1068 = vadd.f32 %v895, %v1049
        %v1069 = vadd.f32 %v896, %v1051
        %v1070 = vadd.f32 %v897, %v1053
        %v1071 = vadd.f32 %v898, %v1055
        %1072 = vrot.lane.b32.xlu0 %v970, 127
        %v1073 = vpop.permute.xlu0 %1072
        %1074 = vrot.lane.b32.xlu0 %v972, 127
        %v1075 = vpop.permute.xlu0 %1074
        %1076 = vrot.lane.b32.xlu0 %v975, 127
        %v1077 = vpop.permute.xlu0 %1076
        %1078 = vrot.lane.b32.xlu0 %v977, 127
        %v1079 = vpop.permute.xlu0 %1078
        %1080 = vrot.lane.b32.xlu0 %v980, 127
        %v1081 = vpop.permute.xlu0 %1080
        %1082 = vrot.lane.b32.xlu0 %v982, 127
        %v1083 = vpop.permute.xlu0 %1082
        %1084 = vrot.lane.b32.xlu0 %v985, 127
        %v1085 = vpop.permute.xlu0 %1084
        %1086 = vrot.lane.b32.xlu0 %v987, 127
        %v1087 = vpop.permute.xlu0 %1086
        %v1096 = vadd.f32 %v951, %v1073
        %v1097 = vadd.f32 %v952, %v1075
        %v1098 = vadd.f32 %v953, %v1077
        %v1099 = vadd.f32 %v954, %v1079
        %v1100 = vadd.f32 %v955, %v1081
        %v1101 = vadd.f32 %v956, %v1083
        %v1102 = vadd.f32 %v957, %v1085
        %v1103 = vadd.f32 %v958, %v1087
        %v1104 = vmul.f32 %v433, -0.04986881
        %v1105 = vmul.f32 %v434, -0.04986881
        %v1106 = vmul.f32 %v435, -0.04986881
        %v1107 = vmul.f32 %v436, -0.04986881
        %v1108 = vmul.f32 %v437, -0.04986881
        %v1109 = vmul.f32 %v438, -0.04986881
        %v1110 = vmul.f32 %v439, -0.04986881
        %v1111 = vmul.f32 %v440, -0.04986881
        %v1112 = vmul.f32 %v441, -0.04986881
        %v1113 = vmul.f32 %v442, -0.04986881
        %v1114 = vmul.f32 %v443, -0.04986881
        %v1115 = vmul.f32 %v444, -0.04986881
        %v1128 = vrot.slane %v1104, 3
        %v1129 = vrot.slane %v1105, 3
        %v1130 = vsel %vm967, %v1128, %v1129
        %v1131 = vrot.slane %v1106, 3
        %v1132 = vsel %vm967, %v1129, %v1131
        %v1133 = vrot.slane %v1107, 3
        %v1134 = vrot.slane %v1108, 3
        %v1135 = vsel %vm967, %v1133, %v1134
        %v1136 = vrot.slane %v1109, 3
        %v1137 = vsel %vm967, %v1134, %v1136
        %v1138 = vrot.slane %v1110, 3
        %v1139 = vrot.slane %v1111, 3
        %v1140 = vsel %vm967, %v1138, %v1139
        %v1141 = vrot.slane %v1112, 3
        %v1142 = vsel %vm967, %v1139, %v1141
        %v1143 = vrot.slane %v1113, 3
        %v1144 = vrot.slane %v1114, 3
        %v1145 = vsel %vm967, %v1143, %v1144
        %v1146 = vrot.slane %v1115, 3
        %v1147 = vsel %vm967, %v1144, %v1146
        %1148 = vrot.lane.b32.xlu0 %v1130, 127
        %v1149 = vpop.permute.xlu0 %1148
        %1150 = vrot.lane.b32.xlu0 %v1132, 127
        %v1151 = vpop.permute.xlu0 %1150
        %1152 = vrot.lane.b32.xlu0 %v1135, 127
        %v1153 = vpop.permute.xlu0 %1152
        %1154 = vrot.lane.b32.xlu0 %v1137, 127
        %v1155 = vpop.permute.xlu0 %1154
        %1156 = vrot.lane.b32.xlu0 %v1140, 127
        %v1157 = vpop.permute.xlu0 %1156
        %1158 = vrot.lane.b32.xlu0 %v1142, 127
        %v1159 = vpop.permute.xlu0 %1158
        %1160 = vrot.lane.b32.xlu0 %v1145, 127
        %v1161 = vpop.permute.xlu0 %1160
        %1162 = vrot.lane.b32.xlu0 %v1147, 127
        %v1163 = vpop.permute.xlu0 %1162
        %v1172 = vadd.f32 %v959, %v1149
        %v1173 = vadd.f32 %v960, %v1151
        %v1174 = vadd.f32 %v961, %v1153
        %v1175 = vadd.f32 %v962, %v1155
        %v1176 = vadd.f32 %v963, %v1157
        %v1177 = vadd.f32 %v964, %v1159
        %v1178 = vadd.f32 %v965, %v1161
        %v1179 = vadd.f32 %v966, %v1163
        %v1180 = vadd.f32 %v1012, %v1149
        %v1181 = vadd.f32 %v1013, %v1151
        %v1182 = vadd.f32 %v1014, %v1153
        %v1183 = vadd.f32 %v1015, %v1155
        %v1184 = vadd.f32 %v1016, %v1157
        %v1185 = vadd.f32 %v1017, %v1159
        %v1186 = vadd.f32 %v1018, %v1161
        %v1187 = vadd.f32 %v1019, %v1163
        %vm1188 = vcmask 1043456
        %v1189 = vrot.slane %v461, 4
        %v1190 = vrot.slane %v462, 4
        %v1191 = vsel %vm1188, %v1189, %v1190
        %v1192 = vrot.slane %v899, 4
        %v1193 = vsel %vm1188, %v1190, %v1192
        %v1194 = vrot.slane %v463, 4
        %v1195 = vrot.slane %v464, 4
        %v1196 = vsel %vm1188, %v1194, %v1195
        %v1197 = vrot.slane %v900, 4
        %v1198 = vsel %vm1188, %v1195, %v1197
        %v1199 = vrot.slane %v465, 4
        %v1200 = vrot.slane %v466, 4
        %v1201 = vsel %vm1188, %v1199, %v1200
        %v1202 = vrot.slane %v901, 4
        %v1203 = vsel %vm1188, %v1200, %v1202
        %v1204 = vrot.slane %v467, 4
        %v1205 = vrot.slane %v468, 4
        %v1206 = vsel %vm1188, %v1204, %v1205
        %v1207 = vrot.slane %v902, 4
        %v1208 = vsel %vm1188, %v1205, %v1207
        %v1217 = vadd.f32 %v1064, %v1191
        %v1218 = vadd.f32 %v1065, %v1193
        %v1219 = vadd.f32 %v1066, %v1196
        %v1220 = vadd.f32 %v1067, %v1198
        %v1221 = vadd.f32 %v1068, %v1201
        %v1222 = vadd.f32 %v1069, %v1203
        %v1223 = vadd.f32 %v1070, %v1206
        %v1224 = vadd.f32 %v1071, %v1208
        %v1225 = vrot.slane %v662, 4
        %v1226 = vrot.slane %v663, 4
        %v1227 = vsel %vm1188, %v1225, %v1226
        %v1228 = vrot.slane %v664, 4
        %v1229 = vsel %vm1188, %v1226, %v1228
        %v1230 = vrot.slane %v665, 4
        %v1231 = vrot.slane %v666, 4
        %v1232 = vsel %vm1188, %v1230, %v1231
        %v1233 = vrot.slane %v667, 4
        %v1234 = vsel %vm1188, %v1231, %v1233
        %v1235 = vrot.slane %v668, 4
        %v1236 = vrot.slane %v669, 4
        %v1237 = vsel %vm1188, %v1235, %v1236
        %v1238 = vrot.slane %v670, 4
        %v1239 = vsel %vm1188, %v1236, %v1238
        %v1240 = vrot.slane %v671, 4
        %v1241 = vrot.slane %v672, 4
        %v1242 = vsel %vm1188, %v1240, %v1241
        %v1243 = vrot.slane %v673, 4
        %v1244 = vsel %vm1188, %v1241, %v1243
        %v1253 = vadd.f32 %v1096, %v1227
        %v1254 = vadd.f32 %v1097, %v1229
        %v1255 = vadd.f32 %v1098, %v1232
        %v1256 = vadd.f32 %v1099, %v1234
        %v1257 = vadd.f32 %v1100, %v1237
        %v1258 = vadd.f32 %v1101, %v1239
        %v1259 = vadd.f32 %v1102, %v1242
        %v1260 = vadd.f32 %v1103, %v1244
        %v1261 = vadd.f32 %v1172, %v1191
        %v1262 = vadd.f32 %v1173, %v1193
        %v1263 = vadd.f32 %v1174, %v1196
        %v1264 = vadd.f32 %v1175, %v1198
        %v1265 = vadd.f32 %v1176, %v1201
        %v1266 = vadd.f32 %v1177, %v1203
        %v1267 = vadd.f32 %v1178, %v1206
        %v1268 = vadd.f32 %v1179, %v1208
        %v1269 = vrot.slane %v1104, 4
        %v1270 = vrot.slane %v1105, 4
        %v1271 = vsel %vm1188, %v1269, %v1270
        %v1272 = vrot.slane %v1106, 4
        %v1273 = vsel %vm1188, %v1270, %v1272
        %v1274 = vrot.slane %v1107, 4
        %v1275 = vrot.slane %v1108, 4
        %v1276 = vsel %vm1188, %v1274, %v1275
        %v1277 = vrot.slane %v1109, 4
        %v1278 = vsel %vm1188, %v1275, %v1277
        %v1279 = vrot.slane %v1110, 4
        %v1280 = vrot.slane %v1111, 4
        %v1281 = vsel %vm1188, %v1279, %v1280
        %v1282 = vrot.slane %v1112, 4
        %v1283 = vsel %vm1188, %v1280, %v1282
        %v1284 = vrot.slane %v1113, 4
        %v1285 = vrot.slane %v1114, 4
        %v1286 = vsel %vm1188, %v1284, %v1285
        %v1287 = vrot.slane %v1115, 4
        %v1288 = vsel %vm1188, %v1285, %v1287
        %v1297 = vadd.f32 %v1180, %v1271
        %v1298 = vadd.f32 %v1181, %v1273
        %v1299 = vadd.f32 %v1182, %v1276
        %v1300 = vadd.f32 %v1183, %v1278
        %v1301 = vadd.f32 %v1184, %v1281
        %v1302 = vadd.f32 %v1185, %v1283
        %v1303 = vadd.f32 %v1186, %v1286
        %v1304 = vadd.f32 %v1187, %v1288
        %1305 = vrot.lane.b32.xlu0 %v1271, 124
        %v1306 = vpop.permute.xlu0 %1305
        %1307 = vrot.lane.b32.xlu0 %v1273, 124
        %v1308 = vpop.permute.xlu0 %1307
        %1309 = vrot.lane.b32.xlu0 %v1276, 124
        %v1310 = vpop.permute.xlu0 %1309
        %1311 = vrot.lane.b32.xlu0 %v1278, 124
        %v1312 = vpop.permute.xlu0 %1311
        %1313 = vrot.lane.b32.xlu0 %v1281, 124
        %v1314 = vpop.permute.xlu0 %1313
        %1315 = vrot.lane.b32.xlu0 %v1283, 124
        %v1316 = vpop.permute.xlu0 %1315
        %1317 = vrot.lane.b32.xlu0 %v1286, 124
        %v1318 = vpop.permute.xlu0 %1317
        %1319 = vrot.lane.b32.xlu0 %v1288, 124
        %v1320 = vpop.permute.xlu0 %1319
        %v1329 = vadd.f32 %v1217, %v1306
        %v1330 = vadd.f32 %v1218, %v1308
        %v1331 = vadd.f32 %v1219, %v1310
        %v1332 = vadd.f32 %v1220, %v1312
        %v1333 = vadd.f32 %v1221, %v1314
        %v1334 = vadd.f32 %v1222, %v1316
        %v1335 = vadd.f32 %v1223, %v1318
        %v1336 = vadd.f32 %v1224, %v1320
        %1345 = vrot.lane.b32.xlu0 %v1253, 127
        %v1346 = vpop.permute.xlu0 %1345
        %1347 = vrot.lane.b32.xlu0 %v1254, 127
        %v1348 = vpop.permute.xlu0 %1347
        %1349 = vrot.lane.b32.xlu0 %v1255, 127
        %v1350 = vpop.permute.xlu0 %1349
        %1351 = vrot.lane.b32.xlu0 %v1256, 127
        %v1352 = vpop.permute.xlu0 %1351
        %1353 = vrot.lane.b32.xlu0 %v1257, 127
        %v1354 = vpop.permute.xlu0 %1353
        %1355 = vrot.lane.b32.xlu0 %v1258, 127
        %v1356 = vpop.permute.xlu0 %1355
        %1357 = vrot.lane.b32.xlu0 %v1259, 127
        %v1358 = vpop.permute.xlu0 %1357
        %1359 = vrot.lane.b32.xlu0 %v1260, 127
        %v1360 = vpop.permute.xlu0 %1359
        %v1369 = vadd.f32 %v1329, %v1346
        %v1370 = vadd.f32 %v1330, %v1348
        %v1371 = vadd.f32 %v1331, %v1350
        %v1372 = vadd.f32 %v1332, %v1352
        %v1373 = vadd.f32 %v1333, %v1354
        %v1374 = vadd.f32 %v1334, %v1356
        %v1375 = vadd.f32 %v1335, %v1358
        %v1376 = vadd.f32 %v1336, %v1360
        %1385 = vrot.lane.b32.xlu0 %v1297, 127
        %v1386 = vpop.permute.xlu0 %1385
        %1387 = vrot.lane.b32.xlu0 %v1298, 127
        %v1388 = vpop.permute.xlu0 %1387
        %1389 = vrot.lane.b32.xlu0 %v1299, 127
        %v1390 = vpop.permute.xlu0 %1389
        %1391 = vrot.lane.b32.xlu0 %v1300, 127
        %v1392 = vpop.permute.xlu0 %1391
        %1393 = vrot.lane.b32.xlu0 %v1301, 127
        %v1394 = vpop.permute.xlu0 %1393
        %1395 = vrot.lane.b32.xlu0 %v1302, 127
        %v1396 = vpop.permute.xlu0 %1395
        %1397 = vrot.lane.b32.xlu0 %v1303, 127
        %v1398 = vpop.permute.xlu0 %1397
        %1399 = vrot.lane.b32.xlu0 %v1304, 127
        %v1400 = vpop.permute.xlu0 %1399
        %v1409 = vadd.f32 %v1261, %v1386
        %v1410 = vadd.f32 %v1262, %v1388
        %v1411 = vadd.f32 %v1263, %v1390
        %v1412 = vadd.f32 %v1264, %v1392
        %v1413 = vadd.f32 %v1265, %v1394
        %v1414 = vadd.f32 %v1266, %v1396
        %v1415 = vadd.f32 %v1267, %v1398
        %v1416 = vadd.f32 %v1268, %v1400
        %1425 = vrot.lane.b32.xlu0 %v1409, 126
        %v1426 = vpop.permute.xlu0 %1425
        %1427 = vrot.lane.b32.xlu0 %v1410, 126
        %v1428 = vpop.permute.xlu0 %1427
        %1429 = vrot.lane.b32.xlu0 %v1411, 126
        %v1430 = vpop.permute.xlu0 %1429
        %1431 = vrot.lane.b32.xlu0 %v1412, 126
        %v1432 = vpop.permute.xlu0 %1431
        %1433 = vrot.lane.b32.xlu0 %v1413, 126
        %v1434 = vpop.permute.xlu0 %1433
        %1435 = vrot.lane.b32.xlu0 %v1414, 126
        %v1436 = vpop.permute.xlu0 %1435
        %1437 = vrot.lane.b32.xlu0 %v1415, 126
        %v1438 = vpop.permute.xlu0 %1437
        %1439 = vrot.lane.b32.xlu0 %v1416, 126
        %v1440 = vpop.permute.xlu0 %1439
        %v1449 = vadd.f32 %v1369, %v1426
        %v1450 = vadd.f32 %v1370, %v1428
        %v1451 = vadd.f32 %v1371, %v1430
        %v1452 = vadd.f32 %v1372, %v1432
        %v1453 = vadd.f32 %v1373, %v1434
        %v1454 = vadd.f32 %v1374, %v1436
        %v1455 = vadd.f32 %v1375, %v1438
        %v1456 = vadd.f32 %v1376, %v1440
        %vm1457 = vcmask 130048
        %1458 = vst.msk [vmem:[%s155] sm:$0xff] %vm1457, %v1449
        %1459 = vst.msk [vmem:[%s155 + $0x8] sm:$0xff] %vm1457, %v1450
        %1460 = vst.msk [vmem:[%s155 + $0x10] sm:$0xff] %vm1457, %v1451
        %1461 = vst.msk [vmem:[%s155 + $0x18] sm:$0xff] %vm1457, %v1452
        %1462 = vst.msk [vmem:[%s155 + $0x20] sm:$0xff] %vm1457, %v1453
        %1463 = vst.msk [vmem:[%s155 + $0x28] sm:$0xff] %vm1457, %v1454
        %1464 = vst.msk [vmem:[%s155 + $0x30] sm:$0xff] %vm1457, %v1455
        %1465 = vst.msk [vmem:[%s155 + $0x38] sm:$0xff] %vm1457, %v1456
        %s1466 = sand.u32 %s68, 1
        %s1467 = scalar_lea.sflag [#allocation4], %s1466
        %s1468 = sand.u32 %s68, 1
        %s1469 = smul.addr %s1468, 64
        %s1470 = scalar_lea.vmem [#allocation5], %s1469
        // Predicated region
        $region29: #{tpu_custom_call.1} parent=23 // pred_check
          %p1471 = pneg %p78
        $region30: #{tpu_custom_call.1} parent=23 // pred_check_branch
          %1473 = sbr.rel (%p1471) target = $region32
        $region31: #{tpu_custom_call.1} parent=23 // pred_region
          %s1474 = smul.u32 4, %s23
          %1476 = vsyncadd %s1467, 0
          %s1477 = smul.addr %s1474, 2
          %s1478 = smul.addr %s22, 8
          %s1479 = sadd.s32 %s1477, %s1478
          %s1480 = smul.addr %s1479, 8
          %s1481 = scalar_lea.hbm %s1, %s1480
          %s1482 = sshll.u32 %s1470, 4
          %s1483 = int_to_ptr.vmem [resolvable:$true] %s1482
          %s1484 = sshll.u32 %s1481, 4
          %s1485 = int_to_ptr.hbm [resolvable:$true] %s1484
          %1490 = dma.vmem_to_hbm [thread:$0]  %s1483, 1024, %s1485, %s1467, 128, 128, 8
        $region32: #{tpu_custom_call.1} parent=23 // pred_fallthru
          _
      $region24: #{tpu_custom_call.1} parent=5 // pred_fallthru
        _
      %p1491 = scmp.le.s32.totalorder 2, %s13
      // Predicated region
      $region33: #{tpu_custom_call.1} parent=5 // pred_check
        %p1492 = pneg %p1491
      $region34: #{tpu_custom_call.1} parent=5 // pred_check_branch
        %1494 = sbr.rel (%p1492) target = $region36
      $region35: #{tpu_custom_call.1} parent=5 // pred_region
        %s1495 = ssub.s32 %s13, 2
        // Predicated region
        $region37: #{tpu_custom_call.1} parent=35 // pred_check
          %p1496 = pneg %p84
        $region38: #{tpu_custom_call.1} parent=35 // pred_check_branch
          %1498 = sbr.rel (%p1496) target = $region40
        $region39: #{tpu_custom_call.1} parent=35 // pred_region
          %s1499 = sand.u32 %s69, 1
          %s1500 = scalar_lea.sflag [#allocation4], %s1499
          %s1501 = sand.u32 %s69, 1
          %s1502 = smul.addr %s1501, 64
          %s1503 = scalar_lea.vmem [#allocation5], %s1502
          %1505 = dma.done %s1500, 1024
        $region40: #{tpu_custom_call.1} parent=35 // pred_fallthru
          _
      $region36: #{tpu_custom_call.1} parent=5 // pred_fallthru
        _
    $region6: #{tpu_custom_call.1} parent=1 // loop_footer
      %s17 = sadd.s32 1, %s13
    $region7: #{tpu_custom_call.1} parent=1 // loop_footer_branch
      %12 = sbr.rel target = $region3
    $region8: #{tpu_custom_call.1} parent=1 // loop_exit
      _
    %1506 = vsyncpa [#allocation3], 1
    %s1507 = scalar_lea.sflag [#allocation3], 1
    %1508 = vsyncpa %s1507, 1
    %1509 = vsyncpa [#allocation4], 1
    %s1510 = scalar_lea.sflag [#allocation4], 1
    %1511 = vsyncpa %s1510, 1

</llo_original>
